<compile_context>
chip_gen: v7x
topology: tpu7x:2x2x1
jax: 0.10.0
libtpu: 0.0.40
codegen_flags: <defaults>
</compile_context>

<pallas_src>
import functools

import jax
import jax.numpy as jnp
from jax.experimental import pallas as pl
from jax.experimental.pallas import tpu as pltpu


_VMEM_LIMIT = 32 * 1024 * 1024   # explicit scoped-VMEM limit (v5e default is 16 MiB)


def _round_up(x, m):
    return ((x + m - 1) // m) * m


def _fit_tile(dim, pref, align):
    """(tile, padded_dim): largest tile <= pref that evenly covers dim.

    Small dims become a single full-dim block (always legal), so no wrapper
    padding / slicing round trips are generated for them."""
    if dim <= pref:
        return dim, dim
    t = (pref // align) * align
    while t >= align:
        if dim % t == 0:
            return t, dim
        t -= align
    return pref, _round_up(dim, pref)            # rare fallback: pad


def _pick_divisor_tile(dim, cap, align):
    """Largest multiple-of-`align` divisor of dim that is <= cap (else dim)."""
    if dim <= cap:
        return dim
    t = (cap // align) * align
    while t >= align:
        if dim % t == 0:
            return t
        t -= align
    return dim


# -----------------------------------------------------------------------------
# Kernel 1: tiled (bias, relu)-fused matmul, bf16 MXU inputs, f32 accumulation
# -----------------------------------------------------------------------------
def _matmul_kernel(a_ref, b_ref, bias_ref, o_ref, acc_ref, *, relu):
    @pl.when(pl.program_id(2) == 0)
    def _():
        acc_ref[...] = jnp.zeros_like(acc_ref)

    acc_ref[...] += jnp.dot(a_ref[...], b_ref[...],
                            preferred_element_type=jnp.float32)

    @pl.when(pl.program_id(2) == pl.num_programs(2) - 1)
    def _():
        out = acc_ref[...] + bias_ref[...]
        if relu:
            out = jnp.maximum(out, 0.0)
        o_ref[...] = out.astype(o_ref.dtype)


def pallas_matmul(a, b, bias=None, relu=False, out_dtype=jnp.float32,
                  tm=256, tn=512, tk=512):
    M, K = a.shape
    K2, N = b.shape
    assert K == K2
    a = a.astype(jnp.bfloat16)          # no-op when caller already passes bf16
    b = b.astype(jnp.bfloat16)          # weights are pre-cast at param prep
    if bias is None:
        bias = jnp.zeros((N,), jnp.float32)
    bias = bias.reshape(1, N).astype(jnp.float32)

    tm, Mp = _fit_tile(M, tm, 8)
    tn, Np = _fit_tile(N, tn, 128)
    tk, Kp = _fit_tile(K, tk, 128)
    if Mp != M or Kp != K:
        a = jnp.pad(a, ((0, Mp - M), (0, Kp - K)))
    if Kp != K or Np != N:
        b = jnp.pad(b, ((0, Kp - K), (0, Np - N)))
    if Np != N:
        bias = jnp.pad(bias, ((0, 0), (0, Np - N)))

    out = pl.pallas_call(
        functools.partial(_matmul_kernel, relu=relu),
        out_shape=jax.ShapeDtypeStruct((Mp, Np), out_dtype),
        grid=(Mp // tm, Np // tn, Kp // tk),
        in_specs=[
            pl.BlockSpec((tm, tk), lambda i, j, k: (i, k)),
            pl.BlockSpec((tk, tn), lambda i, j, k: (k, j)),
            pl.BlockSpec((1, tn), lambda i, j, k: (0, j)),
        ],
        out_specs=pl.BlockSpec((tm, tn), lambda i, j, k: (i, j)),
        scratch_shapes=[pltpu.VMEM((tm, tn), jnp.float32)],
        compiler_params=pltpu.CompilerParams(
            dimension_semantics=("parallel", "parallel", "arbitrary"),
            vmem_limit_bytes=_VMEM_LIMIT),
    )(a, b, bias)
    if Mp != M or Np != N:
        out = out[:M, :N]
    return out


# -----------------------------------------------------------------------------
# Kernel 2: batched "mask embedding . feature" contraction
#           einsum('bqc,bpc->bqp'), grid tiled over batch AND the P axis  [MXU]
# -----------------------------------------------------------------------------
def _bmm_nt_kernel(a_ref, b_ref, o_ref):
    # a: (1, Q, C) bf16, b: (1, tp, C) bf16 -> o: (1, Q, tp), contract over C.
    o_ref[0] = jax.lax.dot_general(
        a_ref[0], b_ref[0], (((1,), (1,)), ((), ())),
        preferred_element_type=jnp.float32).astype(o_ref.dtype)


def batched_matmul_nt(a, b, tp_cap=2048):
    B, Q, C = a.shape
    _, P, _ = b.shape
    tp = _pick_divisor_tile(P, tp_cap, 128)
    return pl.pallas_call(
        _bmm_nt_kernel,
        out_shape=jax.ShapeDtypeStruct((B, Q, P), jnp.bfloat16),
        grid=(B, P // tp),
        in_specs=[
            pl.BlockSpec((1, Q, C), lambda bi, j: (bi, 0, 0)),
            pl.BlockSpec((1, tp, C), lambda bi, j: (bi, j, 0)),
        ],
        out_specs=pl.BlockSpec((1, Q, tp), lambda bi, j: (bi, 0, j)),
        compiler_params=pltpu.CompilerParams(
            dimension_semantics=("parallel", "parallel"),
            vmem_limit_bytes=_VMEM_LIMIT),
    )(a.astype(jnp.bfloat16), b.astype(jnp.bfloat16))


# -----------------------------------------------------------------------------
# Kernel 3: fused bilinear upsample + sigmoid
#   out[g] = sigmoid(A_h @ masks[g] @ A_w^T)  (F.interpolate bilinear,
#   align_corners=False). The wf-contraction is one batched MXU call per mask
#   group, held in a VMEM scratch and reused across H tiles; output is bf16.
# -----------------------------------------------------------------------------
def _upsample_sigmoid_kernel(m_ref, ah_ref, awt_ref, o_ref, upw_ref, *,
                             group, hf):
    # m_ref:   (group*hf, wf) bf16  — current group of low-res masks
    # ah_ref:  (tH, hf)      bf16  — H-interp rows for this output tile
    # awt_ref: (wf, W)       bf16  — W-interp matrix (transposed), resident
    # o_ref:   (group, tH, W) bf16 — sigmoid(upsampled masks)
    # upw_ref: (group*hf, W) bf16 scratch — masks @ A_w^T, once per group
    @pl.when(pl.program_id(1) == 0)
    def _():
        upw_ref[...] = jnp.dot(m_ref[...], awt_ref[...],
                               preferred_element_type=jnp.float32
                               ).astype(jnp.bfloat16)

    ah = ah_ref[...]

    def per_mask(g, carry):
        upw_g = upw_ref[pl.ds(g * hf, hf), :]                     # (hf, W)
        up = jnp.dot(ah, upw_g, preferred_element_type=jnp.float32)
        o_ref[g] = jax.nn.sigmoid(up).astype(o_ref.dtype)         # (tH, W)
        return carry

    jax.lax.fori_loop(0, group, per_mask, 0, unroll=True)


def bilinear_matrix(out_size, in_size):
    i = jnp.arange(out_size, dtype=jnp.float32)
    src = (i + 0.5) * (in_size / out_size) - 0.5
    src = jnp.clip(src, 0.0, in_size - 1.0)
    i0 = jnp.floor(src).astype(jnp.int32)
    i1 = jnp.minimum(i0 + 1, in_size - 1)
    w1 = src - i0.astype(jnp.float32)
    w0 = 1.0 - w1
    m = jnp.zeros((out_size, in_size), jnp.float32)
    m = m.at[jnp.arange(out_size), i0].add(w0)
    m = m.at[jnp.arange(out_size), i1].add(w1)
    return m


def bilinear_upsample_sigmoid(masks, A_h, A_w, group_cap=8, th_cap=64):
    # masks: (B, Q, hf, wf) -> sigmoid(upsampled): (B, Q, H, W) bf16
    B, Q, hf, wf = masks.shape
    H, W = A_h.shape[0], A_w.shape[0]
    BQ = B * Q
    group = 1
    for g in range(min(group_cap, BQ), 0, -1):   # largest divisor of BQ <= cap
        if BQ % g == 0:
            group = g
            break
    tH = _pick_divisor_tile(H, th_cap, 8)

    m = masks.reshape(BQ * hf, wf).astype(jnp.bfloat16)          # free reshape
    out = pl.pallas_call(
        functools.partial(_upsample_sigmoid_kernel, group=group, hf=hf),
        out_shape=jax.ShapeDtypeStruct((BQ, H, W), jnp.bfloat16),
        grid=(BQ // group, H // tH),
        in_specs=[
            pl.BlockSpec((group * hf, wf), lambda i, j: (i, 0)),
            pl.BlockSpec((tH, hf), lambda i, j: (j, 0)),
            pl.BlockSpec((wf, W), lambda i, j: (0, 0)),
        ],
        out_specs=pl.BlockSpec((group, tH, W), lambda i, j: (i, j, 0)),
        scratch_shapes=[pltpu.VMEM((group * hf, W), jnp.bfloat16)],
        compiler_params=pltpu.CompilerParams(
            dimension_semantics=("parallel", "arbitrary"),
            vmem_limit_bytes=_VMEM_LIMIT),
    )(m, A_h.astype(jnp.bfloat16), A_w.T.astype(jnp.bfloat16))
    return out.reshape(B, Q, H, W)


# -----------------------------------------------------------------------------
# Kernel 4: semantic_inference, tiled over the HW axis
#   sem = einsum('qc,qp->cp', softmax(cls)[:, :-1], sigmoid(mask))
#   softmax + no-object drop are hoisted to the (tiny) XLA wrapper; the masks
#   arrive already sigmoid-ed in bf16 from the upsample kernel.
# -----------------------------------------------------------------------------
def _semantic_inference_kernel(probs_ref, m_ref, o_ref):
    o_ref[0] = jax.lax.dot_general(
        probs_ref[0], m_ref[0], (((0,), (0,)), ((), ())),
        preferred_element_type=jnp.float32)                      # (Kc, thw)


def semantic_inference(mask_cls, mask_prob, num_classes, thw_cap=8192):
    # mask_cls: (B, Q, K+1) f32; mask_prob: (B, Q, H, W) bf16 (sigmoid applied)
    B, Q, K1 = mask_cls.shape
    _, _, H, W = mask_prob.shape
    HW = H * W
    thw = _pick_divisor_tile(HW, thw_cap, 128)

    probs = jax.nn.softmax(mask_cls.astype(jnp.float32), axis=-1)
    probs = probs[..., :num_classes].astype(jnp.bfloat16)        # drop no-object
    m = mask_prob.reshape(B, Q, HW)                              # free reshape

    out = pl.pallas_call(
        _semantic_inference_kernel,
        out_shape=jax.ShapeDtypeStruct((B, num_classes, HW), jnp.float32),
        grid=(B, HW // thw),
        in_specs=[
            pl.BlockSpec((1, Q, num_classes), lambda b, j: (b, 0, 0)),
            pl.BlockSpec((1, Q, thw), lambda b, j: (b, 0, j)),
        ],
        out_specs=pl.BlockSpec((1, num_classes, thw), lambda b, j: (b, 0, j)),
        compiler_params=pltpu.CompilerParams(
            dimension_semantics=("parallel", "parallel"),
            vmem_limit_bytes=_VMEM_LIMIT),
    )(probs, m)
    return out.reshape(B, num_classes, H, W)


# -----------------------------------------------------------------------------
# Full MaskFormer inference forward
# -----------------------------------------------------------------------------
def maskformer_forward(images, params):
    """images: (B, 3, H, W) float32 NCHW. Returns (sem_seg, pred_logits, pred_masks)."""
    B, C, H, W = images.shape
    P = params["patch"]
    Hf, Wf = H // P, W // P
    Q = params["query_embed"].shape[0]

    # 1) pixel normalization folded into backbone weights (linear fold):
    #    (x - mean)/std @ W + b  ==  x @ (W*scale) + (b - (mean*scale) @ W)
    scale = jnp.repeat(1.0 / params["pixel_std"], P * P)           # (C*P*P,)
    mean_rep = jnp.repeat(params["pixel_mean"], P * P)
    w_b = (params["w_backbone"] * scale[:, None]).astype(jnp.bfloat16)
    b_b = params["b_backbone"] - (mean_rep * scale) @ params["w_backbone"]

    # 2) backbone proxy: patchify (bf16 XLA layout glue) + linear+relu (Pallas)
    # TODO(synk): fold the patchify gather into the backbone matmul's BlockSpec.
    patches = (images.astype(jnp.bfloat16)
               .reshape(B, C, Hf, P, Wf, P)
               .transpose(0, 2, 4, 1, 3, 5)
               .reshape(B * Hf * Wf, C * P * P))
    feats = pallas_matmul(patches, w_b, b_b, relu=True,
                          out_dtype=jnp.bfloat16)                  # (B*Hf*Wf, Cf)
    Cf = feats.shape[-1]
    feats = feats.reshape(B, Hf * Wf, Cf)                          # bf16

    # 3) sem_seg_head proxy: pooled-feature-conditioned queries. The tiny head
    #    matmuls stay in XLA (Pallas would be pure launch overhead at B*Q x Cf).
    pooled = feats.astype(jnp.float32).mean(axis=1)                # (B, Cf)
    q = params["query_embed"][None, :, :] + pooled[:, None, :]     # (B, Q, Cf)
    mask_cls = q @ params["w_cls"] + params["b_cls"]               # pred_logits
    mask_embed = q @ params["w_mask"] + params["b_mask"]           # (B, Q, Cf)

    pred_masks = batched_matmul_nt(mask_embed.astype(jnp.bfloat16), feats)
    pred_masks = pred_masks.reshape(B, Q, Hf, Wf)                  # low-res masks

    # 4) F.interpolate(size=(H,W), bilinear, align_corners=False) + sigmoid
    A_h = bilinear_matrix(H, Hf)
    A_w = bilinear_matrix(W, Wf)
    mask_prob = bilinear_upsample_sigmoid(pred_masks, A_h, A_w)    # (B,Q,H,W) bf16

    # 5) sem_seg_postprocess is an identity here (no padding crop / no resize).
    # 6) semantic_inference (softmax hoisted, HW-tiled Pallas contraction)
    num_classes = mask_cls.shape[-1] - 1
    sem_seg = semantic_inference(mask_cls, mask_prob, num_classes)  # (B,K,H,W)
    return sem_seg, mask_cls, pred_masks

    # TODO(synk): training path (SetCriterion / HungarianMatcher) and
    # panoptic_inference (data-dependent Python loops with .item()) have no
    # clean Pallas equivalent and are omitted.


# -----------------------------------------------------------------------------
# Pure-JAX f32 reference for a silent correctness check
# -----------------------------------------------------------------------------
def reference_forward(images, params):
    B, C, H, W = images.shape
    P = params["patch"]
    Hf, Wf = H // P, W // P
    x = (images - params["pixel_mean"].reshape(1, C, 1, 1)) / \
        params["pixel_std"].reshape(1, C, 1, 1)
    patches = (x.reshape(B, C, Hf, P, Wf, P)
                 .transpose(0, 2, 4, 1, 3, 5)
                 .reshape(B * Hf * Wf, C * P * P))
    feats = jax.nn.relu(patches @ params["w_backbone"] + params["b_backbone"])
    Cf = feats.shape[-1]
    feats = feats.reshape(B, Hf, Wf, Cf)
    pooled = feats.mean(axis=(1, 2))
    q = params["query_embed"][None] + pooled[:, None, :]
    mask_cls = q @ params["w_cls"] + params["b_cls"]
    mask_embed = q @ params["w_mask"] + params["b_mask"]
    pred_masks = jnp.einsum("bqc,bhwc->bqhw", mask_embed, feats)
    A_h = bilinear_matrix(H, Hf)
    A_w = bilinear_matrix(W, Wf)
    mask_pred = jnp.einsum("Hh,bqhw,Ww->bqHW", A_h, pred_masks, A_w)
    probs = jax.nn.softmax(mask_cls, axis=-1)[..., :-1]
    sem = jnp.einsum("bqk,bqhw->bkhw", probs, jax.nn.sigmoid(mask_pred))
    return sem


# -----------------------------------------------------------------------------
if __name__ == "__main__":
    B, C, H, W = 2, 3, 128, 128        # small NCHW image batch
    patch = 4                          # backbone stride proxy
    Cf = 32                            # feature / hidden dim
    Q = 8                              # num_queries
    num_classes = 4                    # K (+1 no-object class in logits)

    key = jax.random.PRNGKey(0)
    k_img, k0, k1, k2, k3, k4, k5, k6 = jax.random.split(key, 8)

    images = jax.random.uniform(k_img, (B, C, H, W), jnp.float32, 0.0, 255.0)

    params = {
        "patch": patch,
        "pixel_mean": jnp.array([123.675, 116.28, 103.53], jnp.float32),
        "pixel_std": jnp.array([58.395, 57.12, 57.375], jnp.float32),
        "w_backbone": 0.1 * jax.random.normal(k0, (C * patch * patch, Cf), jnp.float32),
        "b_backbone": 0.1 * jax.random.normal(k1, (Cf,), jnp.float32),
        "query_embed": jax.random.normal(k2, (Q, Cf), jnp.float32),
        "w_cls": 0.1 * jax.random.normal(k3, (Cf, num_classes + 1), jnp.float32),
        "b_cls": 0.1 * jax.random.normal(k4, (num_classes + 1,), jnp.float32),
        "w_mask": 0.1 * jax.random.normal(k5, (Cf, Cf), jnp.float32),
        "b_mask": 0.1 * jax.random.normal(k6, (Cf,), jnp.float32),
    }

    sem_seg, mask_cls, pred_masks = maskformer_forward(images, params)
    sem_seg = jax.block_until_ready(sem_seg)

    ref = reference_forward(images, params)
    assert sem_seg.shape == (B, num_classes, H, W)
    # end-to-end bf16 MXU path vs f32 reference
    assert bool(jnp.allclose(sem_seg, ref, rtol=2e-2, atol=3e-2))

    print("KERNEL_OK")
</pallas_src>

<mosaic_0001>
module attributes {stable_mosaic.version = 11 : i64} {
  func.func @_matmul_kernel(%arg0: i32, %arg1: i32, %arg2: i32, %arg3: memref<256x48xbf16, #tpu.memory_space<vmem>>, %arg4: memref<48x32xbf16, #tpu.memory_space<vmem>>, %arg5: memref<1x32xf32, #tpu.memory_space<vmem>>, %arg6: memref<256x32xbf16, #tpu.memory_space<vmem>>, %arg7: memref<256x32xf32, #tpu.memory_space<vmem>>) attributes {dimension_semantics = [#tpu.dimension_semantics<parallel>, #tpu.dimension_semantics<parallel>, #tpu.dimension_semantics<arbitrary>], iteration_bounds = array<i64: 8, 1, 1>, scalar_prefetch = 0 : i64, scratch_operands = 1 : i64, tpu.core_type = #tpu.core_type<tc>, window_params = [{transform_indices = @transform_0, window_bounds = array<i64: 256, 48>}, {transform_indices = @transform_1, window_bounds = array<i64: 48, 32>}, {transform_indices = @transform_2, window_bounds = array<i64: 1, 32>}, {transform_indices = @transform_3, window_bounds = array<i64: 256, 32>}]} {
    %c0_i32 = arith.constant 0 : i32
    %0 = arith.cmpi eq, %arg2, %c0_i32 : i32
    %1 = arith.extui %0 : i1 to i32
    %c0_i32_0 = arith.constant 0 : i32
    %2 = arith.cmpi ne, %1, %c0_i32_0 : i32
    scf.if %2 {
      %cst_10 = arith.constant 0.000000e+00 : f32
      %12 = vector.broadcast %cst_10 : f32 to vector<256x32xf32>
      %c0_11 = arith.constant 0 : index
      %c0_12 = arith.constant 0 : index
      %13 = vector.load %arg7[%c0_11, %c0_12] : memref<256x32xf32, #tpu.memory_space<vmem>>, vector<256x32xf32>
      tpu.vector_store %arg7[%c0_11, %c0_12], %12 {strides = array<i32>} : memref<256x32xf32, #tpu.memory_space<vmem>>, vector<256x32xf32>,
    } else {
    }
    %c0 = arith.constant 0 : index
    %c0_1 = arith.constant 0 : index
    %3 = vector.load %arg7[%c0, %c0_1] : memref<256x32xf32, #tpu.memory_space<vmem>>, vector<256x32xf32>
    %c0_2 = arith.constant 0 : index
    %c0_3 = arith.constant 0 : index
    %4 = vector.load %arg3[%c0_2, %c0_3] : memref<256x48xbf16, #tpu.memory_space<vmem>>, vector<256x48xbf16>
    %c0_4 = arith.constant 0 : index
    %c0_5 = arith.constant 0 : index
    %5 = vector.load %arg4[%c0_4, %c0_5] : memref<48x32xbf16, #tpu.memory_space<vmem>>, vector<48x32xbf16>
    %cst = arith.constant dense<0.000000e+00> : vector<256x32xf32>
    %6 = tpu.matmul %4, %5, %cst {dimension_numbers = #tpu.dot_dimension_numbers<[1], [0], [0], [1], [0, 0, 1, 1], [], []>} : vector<256x48xbf16>, vector<48x32xbf16>, vector<256x32xf32> -> vector<256x32xf32>
    %7 = arith.addf %3, %6 : vector<256x32xf32>
    %c0_6 = arith.constant 0 : index
    %c0_7 = arith.constant 0 : index
    %8 = vector.load %arg7[%c0_6, %c0_7] : memref<256x32xf32, #tpu.memory_space<vmem>>, vector<256x32xf32>
    tpu.vector_store %arg7[%c0_6, %c0_7], %7 {strides = array<i32>} : memref<256x32xf32, #tpu.memory_space<vmem>>, vector<256x32xf32>,
    %c0_i32_8 = arith.constant 0 : i32
    %9 = arith.cmpi eq, %arg2, %c0_i32_8 : i32
    %10 = arith.extui %9 : i1 to i32
    %c0_i32_9 = arith.constant 0 : i32
    %11 = arith.cmpi ne, %10, %c0_i32_9 : i32
    scf.if %11 {
      %c0_10 = arith.constant 0 : index
      %c0_11 = arith.constant 0 : index
      %12 = vector.load %arg7[%c0_10, %c0_11] : memref<256x32xf32, #tpu.memory_space<vmem>>, vector<256x32xf32>
      %c0_12 = arith.constant 0 : index
      %c0_13 = arith.constant 0 : index
      %13 = vector.load %arg5[%c0_12, %c0_13] : memref<1x32xf32, #tpu.memory_space<vmem>>, vector<1x32xf32>
      %14 = vector.broadcast %13 : vector<1x32xf32> to vector<256x32xf32>
      %15 = arith.addf %12, %14 : vector<256x32xf32>
      %cst_14 = arith.constant 0.000000e+00 : f32
      %16 = vector.broadcast %cst_14 : f32 to vector<256x32xf32>
      %17 = arith.maximumf %15, %16 : vector<256x32xf32>
      %18 = arith.truncf %17 : vector<256x32xf32> to vector<256x32xbf16>
      %c0_15 = arith.constant 0 : index
      %c0_16 = arith.constant 0 : index
      %19 = vector.load %arg6[%c0_15, %c0_16] : memref<256x32xbf16, #tpu.memory_space<vmem>>, vector<256x32xbf16>
      tpu.vector_store %arg6[%c0_15, %c0_16], %18 {strides = array<i32>} : memref<256x32xbf16, #tpu.memory_space<vmem>>, vector<256x32xbf16>,
    } else {
    }
    return
  }
  func.func @transform_0(%arg0: i32, %arg1: i32, %arg2: i32) -> (i32, i32) {
    %c0_i32 = arith.constant 0 : i32
    return %arg0, %arg2 : i32, i32
  }
  func.func @transform_1(%arg0: i32, %arg1: i32, %arg2: i32) -> (i32, i32) {
    %c0_i32 = arith.constant 0 : i32
    return %arg2, %arg1 : i32, i32
  }
  func.func @transform_2(%arg0: i32, %arg1: i32, %arg2: i32) -> (i32, i32) {
    %c0_i32 = arith.constant 0 : i32
    %c0_i32_0 = arith.constant 0 : i32
    return %c0_i32, %arg1 : i32, i32
  }
  func.func @transform_3(%arg0: i32, %arg1: i32, %arg2: i32) -> (i32, i32) {
    %c0_i32 = arith.constant 0 : i32
    return %arg0, %arg1 : i32, i32
  }
}

</mosaic_0001>

<llo_original>
// kernel: tpu_custom_call.1
$region0: #{tpu_custom_call.1}
  #allocation0 [shape = 'u32[]', space=smem, size = 0x4, offset = 0x4, fixed_abs, tag = 'smem constant byte address 0x4 - core index']
  #allocation1 [shape = 'u32[144,128]{1,0:T(1,128)}', space=vmem, size = 0x12000, scoped, tag = 'internal scratch']
  #allocation2 [shape = 'f32[256,32]{1,0:T(8,128)}', space=vmem, size = 0x20000, scoped, tag = 'scratch operand']
  %s0 = inlined_call_operand.vmem [shape: bf16[2048,48], index: 0, kind: input, shape index: {}]
  %s1 = inlined_call_operand.vmem [shape: bf16[48,32], index: 1, kind: input, shape index: {}]
  %s2 = inlined_call_operand.vmem [shape: f32[1,32], index: 2, kind: input, shape index: {}]
  %s3 = inlined_call_operand.vmem [shape: bf16[2048,32], index: 3, kind: output, shape index: {}]
  %s4 = sld [smem:[#allocation0]]
  $region53: #{tpu_custom_call.1} parent=0
    _
  %s6 = ssub.s32 1, %s4
  %s7 = scalar_select 0, %s6, %s4
  loop: start=0, step=1, limit=10
  $region2: #{tpu_custom_call.1} parent=0 // loop_pre_header
    _
  $region3: #{tpu_custom_call.1} parent=0 // loop_header
    %s9 = sphi 0, %s13
    %p10 = scmp.ge.s32.totalorder %s9, 10
    %s16 = sphi 0, %s35
    %s17 = sphi 0, %s31
    %s18 = sphi 0, %s27
    %s19 = sphi 0, %s16
    %s20 = sphi 0, %s17
    %s21 = sphi 0, %s18
    %s22 = sphi 0, %s19
    %s23 = sphi 0, %s20
    %s24 = sphi 0, %s21
    %s40 = sphi 0, %s42
    %s43 = sphi 0, %s40
    %s44 = sphi 0, %s43
    %s60 = sphi 0, %s44
    %s68 = sphi 0, %s70
    %s71 = sphi 0, %s68
    %s72 = sphi 0, %s71
    %s88 = sphi 0, %s72
    %s94 = sphi 0, %s96
    %s97 = sphi 0, %s94
    %s98 = sphi 0, %s97
    %s114 = sphi 0, %s98
    %s122 = sphi 0, %s124
    %s125 = sphi 0, %s122
    %s126 = sphi 0, %s125
    %s142 = sphi 0, %s126
  $region4: #{tpu_custom_call.1} parent=0 // loop_header_branch
    %12 = sbr.rel (%p10) target = $region8
  $region5: #{tpu_custom_call.1} parent=0 // loop_body
    %s14 = ssub.s32 %s9, 1
    %s15 = ssub.s32 %s9, 2
    %s25 = sadd.s32 1, %s18
    %p26 = scmp.ge.s32.totalorder %s25, 1
    %s27 = scalar_select %p26, 0, %s25
    %s28 = sadd.s32 1, %s17
    %s29 = scalar_select %p26, %s28, %s17
    %p30 = scmp.ge.s32.totalorder %s29, 1
    %s31 = scalar_select %p30, 0, %s29
    %s32 = sadd.s32 1, %s16
    %s33 = scalar_select %p30, %s32, %s16
    %p34 = scmp.ge.s32.totalorder %s33, 8
    %s35 = scalar_select %p34, 0, %s33
    %s36 = ssub.s32 %s16, %s35
    %s37 = ssub.s32 %s18, %s27
    %s38 = sor.u32 %s36, %s37
    %p39 = scmp.eq.s32.totalorder %s38, 0
    %s41 = sadd.s32 %s40, 1
    %s42 = scalar_select %p39, %s40, %s41
    %p45 = pneg %p39
    %p46 = scmp.eq.s32.totalorder %s9, 7
    %p47 = por %p45, %p46
    %p48 = scmp.ne.s32.totalorder %s40, %s43
    %p49 = scmp.eq.s32.totalorder %s9, 0
    %p50 = por %p48, %p49
    %p51 = scmp.ne.s32.totalorder %s40, %s43
    %p52 = scmp.eq.s32.totalorder %s14, 7
    %p53 = por %p51, %p52
    %p54 = scmp.ne.s32.totalorder %s43, %s44
    %p55 = scmp.eq.s32.totalorder %s14, 0
    %p56 = por %p54, %p55
    %p57 = scmp.ne.s32.totalorder %s43, %s44
    %p58 = scmp.eq.s32.totalorder %s15, 7
    %p59 = por %p57, %p58
    %p61 = scmp.ne.s32.totalorder %s44, %s60
    %p62 = scmp.eq.s32.totalorder %s15, 0
    %p63 = por %p61, %p62
    %s64 = ssub.s32 %s18, %s27
    %s65 = ssub.s32 %s17, %s31
    %s66 = sor.u32 %s64, %s65
    %p67 = scmp.eq.s32.totalorder %s66, 0
    %s69 = sadd.s32 %s68, 1
    %s70 = scalar_select %p67, %s68, %s69
    %p73 = pneg %p67
    %p74 = scmp.eq.s32.totalorder %s9, 7
    %p75 = por %p73, %p74
    %p76 = scmp.ne.s32.totalorder %s68, %s71
    %p77 = scmp.eq.s32.totalorder %s9, 0
    %p78 = por %p76, %p77
    %p79 = scmp.ne.s32.totalorder %s68, %s71
    %p80 = scmp.eq.s32.totalorder %s14, 7
    %p81 = por %p79, %p80
    %p82 = scmp.ne.s32.totalorder %s71, %s72
    %p83 = scmp.eq.s32.totalorder %s14, 0
    %p84 = por %p82, %p83
    %p85 = scmp.ne.s32.totalorder %s71, %s72
    %p86 = scmp.eq.s32.totalorder %s15, 7
    %p87 = por %p85, %p86
    %p89 = scmp.ne.s32.totalorder %s72, %s88
    %p90 = scmp.eq.s32.totalorder %s15, 0
    %p91 = por %p89, %p90
    %s92 = ssub.s32 %s17, %s31
    %p93 = scmp.eq.s32.totalorder %s92, 0
    %s95 = sadd.s32 %s94, 1
    %s96 = scalar_select %p93, %s94, %s95
    %p99 = pneg %p93
    %p100 = scmp.eq.s32.totalorder %s9, 7
    %p101 = por %p99, %p100
    %p102 = scmp.ne.s32.totalorder %s94, %s97
    %p103 = scmp.eq.s32.totalorder %s9, 0
    %p104 = por %p102, %p103
    %p105 = scmp.ne.s32.totalorder %s94, %s97
    %p106 = scmp.eq.s32.totalorder %s14, 7
    %p107 = por %p105, %p106
    %p108 = scmp.ne.s32.totalorder %s97, %s98
    %p109 = scmp.eq.s32.totalorder %s14, 0
    %p110 = por %p108, %p109
    %p111 = scmp.ne.s32.totalorder %s97, %s98
    %p112 = scmp.eq.s32.totalorder %s15, 7
    %p113 = por %p111, %p112
    %p115 = scmp.ne.s32.totalorder %s98, %s114
    %p116 = scmp.eq.s32.totalorder %s15, 0
    %p117 = por %p115, %p116
    %s118 = ssub.s32 %s16, %s35
    %s119 = ssub.s32 %s17, %s31
    %s120 = sor.u32 %s118, %s119
    %p121 = scmp.eq.s32.totalorder %s120, 0
    %s123 = sadd.s32 %s122, 1
    %s124 = scalar_select %p121, %s122, %s123
    %p127 = pneg %p121
    %p128 = scmp.eq.s32.totalorder %s9, 7
    %p129 = por %p127, %p128
    %p130 = scmp.ne.s32.totalorder %s122, %s125
    %p131 = scmp.eq.s32.totalorder %s9, 0
    %p132 = por %p130, %p131
    %p133 = scmp.ne.s32.totalorder %s122, %s125
    %p134 = scmp.eq.s32.totalorder %s14, 7
    %p135 = por %p133, %p134
    %p136 = scmp.ne.s32.totalorder %s125, %s126
    %p137 = scmp.eq.s32.totalorder %s14, 0
    %p138 = por %p136, %p137
    %p139 = scmp.ne.s32.totalorder %s125, %s126
    %p140 = scmp.eq.s32.totalorder %s15, 7
    %p141 = por %p139, %p140
    %p143 = scmp.ne.s32.totalorder %s126, %s142
    %p144 = scmp.eq.s32.totalorder %s15, 0
    %p145 = por %p143, %p144
    %p146 = scmp.le.s32.totalorder 1, %s9
    %p147 = scmp.lt.s32.totalorder %s9, 9
    %p148 = pnand %p146, %p147
    %p149 = pneg %p148
    // Predicated region
    $region9: #{tpu_custom_call.1} parent=5 // pred_check
      _
    $region10: #{tpu_custom_call.1} parent=5 // pred_check_branch
      %151 = sbr.rel (%p148) target = $region12
    $region11: #{tpu_custom_call.1} parent=5 // pred_region
      %s152 = ssub.s32 %s9, 1
      // Predicated region
      $region13: #{tpu_custom_call.1} parent=11 // pred_check
        %p153 = pneg %p84
      $region14: #{tpu_custom_call.1} parent=11 // pred_check_branch
        %155 = sbr.rel (%p153) target = $region16
      $region15: #{tpu_custom_call.1} parent=11 // pred_region
        %s156 = smul.u32 6, %s21
        %p157 = scmp.lt.s32.totalorder %s156, 5
        %s158 = scalar_select %p157, %s156, 5
        %p159 = scmp.lt.s32.totalorder %s20, 0
        %s160 = scalar_select %p159, %s20, 0
        %s161 = sadd.s32 %s160, %s158
        %s162 = smul.addr %s161, 4
        %s163 = scalar_lea.vmem %s1, %s162
        %s164 = smul.u32 6, %s21
      $region16: #{tpu_custom_call.1} parent=11 // pred_fallthru
        _
      // Predicated region
      $region17: #{tpu_custom_call.1} parent=11 // pred_check
        %p165 = pneg %p110
      $region18: #{tpu_custom_call.1} parent=11 // pred_check_branch
        %167 = sbr.rel (%p165) target = $region20
      $region19: #{tpu_custom_call.1} parent=11 // pred_region
        %p168 = scmp.lt.s32.totalorder %s20, 0
        %s169 = scalar_select %p168, %s20, 0
        %s170 = scalar_lea.vmem %s2, %s169
      $region20: #{tpu_custom_call.1} parent=11 // pred_fallthru
        _
    $region12: #{tpu_custom_call.1} parent=5 // pred_fallthru
      _
    %p171 = scmp.lt.s32.totalorder %s9, 8
    // Predicated region
    $region21: #{tpu_custom_call.1} parent=5 // pred_check
      %p172 = pneg %p171
    $region22: #{tpu_custom_call.1} parent=5 // pred_check_branch
      %174 = sbr.rel (%p172) target = $region24
    $region23: #{tpu_custom_call.1} parent=5 // pred_region
      // Predicated region
      $region25: #{tpu_custom_call.1} parent=23 // pred_check
        %p175 = pneg %p50
      $region26: #{tpu_custom_call.1} parent=23 // pred_check_branch
        %177 = sbr.rel (%p175) target = $region28
      $region27: #{tpu_custom_call.1} parent=23 // pred_region
        %s178 = smul.u32 32, %s16
        %p179 = scmp.lt.s32.totalorder %s178, 255
        %s180 = scalar_select %p179, %s178, 255
        %p181 = scmp.lt.s32.totalorder %s18, 0
        %s182 = scalar_select %p181, %s18, 0
        %s183 = sadd.s32 %s182, %s180
        %s184 = smul.addr %s183, 4
        %s185 = scalar_lea.vmem %s0, %s184
        %s186 = smul.u32 32, %s16
      $region28: #{tpu_custom_call.1} parent=23 // pred_fallthru
        _
    $region24: #{tpu_custom_call.1} parent=5 // pred_fallthru
      _
    %p187 = scmp.le.s32.totalorder 1, %s9
    %p188 = scmp.lt.s32.totalorder %s9, 9
    %p189 = pnand %p187, %p188
    %p190 = pneg %p189
    // Predicated region
    $region29: #{tpu_custom_call.1} parent=5 // pred_check
      _
    $region30: #{tpu_custom_call.1} parent=5 // pred_check_branch
      %192 = sbr.rel (%p189) target = $region32
    $region31: #{tpu_custom_call.1} parent=5 // pred_region
      %s193 = ssub.s32 %s9, 1
      %s194 = smul.u32 32, %s19
      %p195 = scmp.lt.s32.totalorder %s194, 255
      %s196 = scalar_select %p195, %s194, 255
      %p197 = scmp.lt.s32.totalorder %s21, 0
      %s198 = scalar_select %p197, %s21, 0
      %s199 = sadd.s32 %s198, %s196
      %s200 = smul.addr %s199, 4
      %s201 = scalar_lea.vmem %s0, %s200
      %p202 = pneg %p56
      %p203 = pneg %p53
      %s204 = smul.u32 6, %s21
      %p205 = scmp.lt.s32.totalorder %s204, 5
      %s206 = scalar_select %p205, %s204, 5
      %p207 = scmp.lt.s32.totalorder %s20, 0
      %s208 = scalar_select %p207, %s20, 0
      %s209 = sadd.s32 %s208, %s206
      %s210 = smul.addr %s209, 4
      %s211 = scalar_lea.vmem %s1, %s210
      %p212 = pneg %p84
      %p213 = pneg %p81
      %p214 = scmp.lt.s32.totalorder %s20, 0
      %s215 = scalar_select %p214, %s20, 0
      %s216 = scalar_lea.vmem %s2, %s215
      %p217 = pneg %p110
      %p218 = pneg %p107
      %p219 = pneg %p138
      %p220 = pneg %p135
      %s221 = smul.u32 32, %s19
      %p222 = scmp.lt.s32.totalorder %s221, 255
      %s223 = scalar_select %p222, %s221, 255
      %p224 = scmp.lt.s32.totalorder %s20, 0
      %s225 = scalar_select %p224, %s20, 0
      %s226 = sadd.s32 %s225, %s223
      %s227 = smul.addr %s226, 4
      %s228 = scalar_lea.vmem %s3, %s227
      %s229 = smul.u32 32, %s19
      %p230 = scmp.lt.s32.totalorder %s229, 255
      %s231 = scalar_select %p230, %s229, 255
      %p232 = scmp.lt.s32.totalorder %s21, 0
      %s233 = scalar_select %p232, %s21, 0
      %s234 = sadd.s32 %s233, %s231
      %s235 = smul.addr %s234, 4
      %s236 = scalar_lea.vmem %s0, %s235
      %s237 = smul.u32 32, %s19
      %s238 = smul.u32 6, %s21
      %p239 = scmp.lt.s32.totalorder %s238, 5
      %s240 = scalar_select %p239, %s238, 5
      %p241 = scmp.lt.s32.totalorder %s20, 0
      %s242 = scalar_select %p241, %s20, 0
      %s243 = sadd.s32 %s242, %s240
      %s244 = smul.addr %s243, 4
      %s245 = scalar_lea.vmem %s1, %s244
      %s246 = smul.u32 6, %s21
      %p247 = scmp.lt.s32.totalorder %s20, 0
      %s248 = scalar_select %p247, %s20, 0
      %s249 = scalar_lea.vmem %s2, %s248
      %s250 = smul.u32 32, %s19
      %p251 = scmp.lt.s32.totalorder %s250, 255
      %s252 = scalar_select %p251, %s250, 255
      %p253 = scmp.lt.s32.totalorder %s20, 0
      %s254 = scalar_select %p253, %s20, 0
      %s255 = sadd.s32 %s254, %s252
      %s256 = smul.addr %s255, 4
      %s257 = scalar_lea.vmem %s3, %s256
      %s258 = smul.u32 32, %s19
      %p260 = scmp.eq.s32.totalorder %s21, 0
      // Predicated region
      $region33: #{tpu_custom_call.1} parent=31 // pred_check
        %p261 = pneg %p260
      $region34: #{tpu_custom_call.1} parent=31 // pred_check_branch
        %263 = sbr.rel (%p261) target = $region36
      $region35: #{tpu_custom_call.1} parent=31 // pred_region
        %vm264 = vcmask 261120
        %265 = vst.msk [vmem:[#allocation2] sm:$0xff] %vm264, 0.0
        %266 = vst.msk [vmem:[#allocation2 + $0x8] sm:$0xff] %vm264, 0.0
        %267 = vst.msk [vmem:[#allocation2 + $0x10] sm:$0xff] %vm264, 0.0
        %268 = vst.msk [vmem:[#allocation2 + $0x18] sm:$0xff] %vm264, 0.0
        %269 = vst.msk [vmem:[#allocation2 + $0x20] sm:$0xff] %vm264, 0.0
        %270 = vst.msk [vmem:[#allocation2 + $0x28] sm:$0xff] %vm264, 0.0
        %271 = vst.msk [vmem:[#allocation2 + $0x30] sm:$0xff] %vm264, 0.0
        %272 = vst.msk [vmem:[#allocation2 + $0x38] sm:$0xff] %vm264, 0.0
        %273 = vst.msk [vmem:[#allocation2 + $0x40] sm:$0xff] %vm264, 0.0
        %274 = vst.msk [vmem:[#allocation2 + $0x48] sm:$0xff] %vm264, 0.0
        %275 = vst.msk [vmem:[#allocation2 + $0x50] sm:$0xff] %vm264, 0.0
        %276 = vst.msk [vmem:[#allocation2 + $0x58] sm:$0xff] %vm264, 0.0
        %277 = vst.msk [vmem:[#allocation2 + $0x60] sm:$0xff] %vm264, 0.0
        %278 = vst.msk [vmem:[#allocation2 + $0x68] sm:$0xff] %vm264, 0.0
        %279 = vst.msk [vmem:[#allocation2 + $0x70] sm:$0xff] %vm264, 0.0
        %280 = vst.msk [vmem:[#allocation2 + $0x78] sm:$0xff] %vm264, 0.0
        %281 = vst.msk [vmem:[#allocation2 + $0x80] sm:$0xff] %vm264, 0.0
        %282 = vst.msk [vmem:[#allocation2 + $0x88] sm:$0xff] %vm264, 0.0
        %283 = vst.msk [vmem:[#allocation2 + $0x90] sm:$0xff] %vm264, 0.0
        %284 = vst.msk [vmem:[#allocation2 + $0x98] sm:$0xff] %vm264, 0.0
        %285 = vst.msk [vmem:[#allocation2 + $0xa0] sm:$0xff] %vm264, 0.0
        %286 = vst.msk [vmem:[#allocation2 + $0xa8] sm:$0xff] %vm264, 0.0
        %287 = vst.msk [vmem:[#allocation2 + $0xb0] sm:$0xff] %vm264, 0.0
        %288 = vst.msk [vmem:[#allocation2 + $0xb8] sm:$0xff] %vm264, 0.0
        %289 = vst.msk [vmem:[#allocation2 + $0xc0] sm:$0xff] %vm264, 0.0
        %290 = vst.msk [vmem:[#allocation2 + $0xc8] sm:$0xff] %vm264, 0.0
        %291 = vst.msk [vmem:[#allocation2 + $0xd0] sm:$0xff] %vm264, 0.0
        %292 = vst.msk [vmem:[#allocation2 + $0xd8] sm:$0xff] %vm264, 0.0
        %293 = vst.msk [vmem:[#allocation2 + $0xe0] sm:$0xff] %vm264, 0.0
        %294 = vst.msk [vmem:[#allocation2 + $0xe8] sm:$0xff] %vm264, 0.0
        %295 = vst.msk [vmem:[#allocation2 + $0xf0] sm:$0xff] %vm264, 0.0
        %296 = vst.msk [vmem:[#allocation2 + $0xf8] sm:$0xff] %vm264, 0.0
      $region36: #{tpu_custom_call.1} parent=31 // pred_fallthru
        _
      %v297 = vld [vmem:[#allocation2] sm:$0xff]
      %v298 = vld [vmem:[#allocation2 + $0x8] sm:$0xff]
      %v299 = vld [vmem:[#allocation2 + $0x10] sm:$0xff]
      %v300 = vld [vmem:[#allocation2 + $0x18] sm:$0xff]
      %v301 = vld [vmem:[#allocation2 + $0x20] sm:$0xff]
      %v302 = vld [vmem:[#allocation2 + $0x28] sm:$0xff]
      %v303 = vld [vmem:[#allocation2 + $0x30] sm:$0xff]
      %v304 = vld [vmem:[#allocation2 + $0x38] sm:$0xff]
      %v305 = vld [vmem:[#allocation2 + $0x40] sm:$0xff]
      %v306 = vld [vmem:[#allocation2 + $0x48] sm:$0xff]
      %v307 = vld [vmem:[#allocation2 + $0x50] sm:$0xff]
      %v308 = vld [vmem:[#allocation2 + $0x58] sm:$0xff]
      %v309 = vld [vmem:[#allocation2 + $0x60] sm:$0xff]
      %v310 = vld [vmem:[#allocation2 + $0x68] sm:$0xff]
      %v311 = vld [vmem:[#allocation2 + $0x70] sm:$0xff]
      %v312 = vld [vmem:[#allocation2 + $0x78] sm:$0xff]
      %v313 = vld [vmem:[#allocation2 + $0x80] sm:$0xff]
      %v314 = vld [vmem:[#allocation2 + $0x88] sm:$0xff]
      %v315 = vld [vmem:[#allocation2 + $0x90] sm:$0xff]
      %v316 = vld [vmem:[#allocation2 + $0x98] sm:$0xff]
      %v317 = vld [vmem:[#allocation2 + $0xa0] sm:$0xff]
      %v318 = vld [vmem:[#allocation2 + $0xa8] sm:$0xff]
      %v319 = vld [vmem:[#allocation2 + $0xb0] sm:$0xff]
      %v320 = vld [vmem:[#allocation2 + $0xb8] sm:$0xff]
      %v321 = vld [vmem:[#allocation2 + $0xc0] sm:$0xff]
      %v322 = vld [vmem:[#allocation2 + $0xc8] sm:$0xff]
      %v323 = vld [vmem:[#allocation2 + $0xd0] sm:$0xff]
      %v324 = vld [vmem:[#allocation2 + $0xd8] sm:$0xff]
      %v325 = vld [vmem:[#allocation2 + $0xe0] sm:$0xff]
      %v326 = vld [vmem:[#allocation2 + $0xe8] sm:$0xff]
      %v327 = vld [vmem:[#allocation2 + $0xf0] sm:$0xff]
      %v328 = vld [vmem:[#allocation2 + $0xf8] sm:$0xff]
      %v329 = vld [vmem:[%s236] sm:$0xf]
      %v330 = vld [vmem:[%s236 + $0x4] sm:$0xf]
      %v331 = vld [vmem:[%s236 + $0x8] sm:$0xf]
      %v332 = vld [vmem:[%s236 + $0xc] sm:$0xf]
      %v333 = vld [vmem:[%s236 + $0x10] sm:$0xf]
      %v334 = vld [vmem:[%s236 + $0x14] sm:$0xf]
      %v335 = vld [vmem:[%s236 + $0x18] sm:$0xf]
      %v336 = vld [vmem:[%s236 + $0x1c] sm:$0xf]
      %v337 = vld [vmem:[%s236 + $0x20] sm:$0xf]
      %v338 = vld [vmem:[%s236 + $0x24] sm:$0xf]
      %v339 = vld [vmem:[%s236 + $0x28] sm:$0xf]
      %v340 = vld [vmem:[%s236 + $0x2c] sm:$0xf]
      %v341 = vld [vmem:[%s236 + $0x30] sm:$0xf]
      %v342 = vld [vmem:[%s236 + $0x34] sm:$0xf]
      %v343 = vld [vmem:[%s236 + $0x38] sm:$0xf]
      %v344 = vld [vmem:[%s236 + $0x3c] sm:$0xf]
      %v345 = vld [vmem:[%s236 + $0x40] sm:$0xf]
      %v346 = vld [vmem:[%s236 + $0x44] sm:$0xf]
      %v347 = vld [vmem:[%s236 + $0x48] sm:$0xf]
      %v348 = vld [vmem:[%s236 + $0x4c] sm:$0xf]
      %v349 = vld [vmem:[%s236 + $0x50] sm:$0xf]
      %v350 = vld [vmem:[%s236 + $0x54] sm:$0xf]
      %v351 = vld [vmem:[%s236 + $0x58] sm:$0xf]
      %v352 = vld [vmem:[%s236 + $0x5c] sm:$0xf]
      %v353 = vld [vmem:[%s236 + $0x60] sm:$0xf]
      %v354 = vld [vmem:[%s236 + $0x64] sm:$0xf]
      %v355 = vld [vmem:[%s236 + $0x68] sm:$0xf]
      %v356 = vld [vmem:[%s236 + $0x6c] sm:$0xf]
      %v357 = vld [vmem:[%s236 + $0x70] sm:$0xf]
      %v358 = vld [vmem:[%s236 + $0x74] sm:$0xf]
      %v359 = vld [vmem:[%s236 + $0x78] sm:$0xf]
      %v360 = vld [vmem:[%s236 + $0x7c] sm:$0xf]
      %v361 = vld [vmem:[%s245] sm:$0xf]
      %v362 = vld [vmem:[%s245 + $0x4] sm:$0xf]
      %v363 = vld [vmem:[%s245 + $0x8] sm:$0xf]
      %v364 = vld [vmem:[%s245 + $0xc] sm:$0xf]
      %v365 = vld [vmem:[%s245 + $0x10] sm:$0xf]
      %v366 = vld [vmem:[%s245 + $0x14] sm:$0xf]
      %v399 = vunpack.c.l.b16 %v329
      %v400 = vunpack.c.l.b16 %v330
      %v401 = vunpack.c.l.b16 %v331
      %v402 = vunpack.c.l.b16 %v332
      %v403 = vunpack.c.l.b16 %v333
      %v404 = vunpack.c.l.b16 %v334
      %v405 = vunpack.c.l.b16 %v335
      %v406 = vunpack.c.l.b16 %v336
      %v407 = vunpack.c.l.b16 %v337
      %v408 = vunpack.c.l.b16 %v338
      %v409 = vunpack.c.l.b16 %v339
      %v410 = vunpack.c.l.b16 %v340
      %v411 = vunpack.c.l.b16 %v341
      %v412 = vunpack.c.l.b16 %v342
      %v413 = vunpack.c.l.b16 %v343
      %v414 = vunpack.c.l.b16 %v344
      %v415 = vunpack.c.l.b16 %v345
      %v416 = vunpack.c.l.b16 %v346
      %v417 = vunpack.c.l.b16 %v347
      %v418 = vunpack.c.l.b16 %v348
      %v419 = vunpack.c.l.b16 %v349
      %v420 = vunpack.c.l.b16 %v350
      %v421 = vunpack.c.l.b16 %v351
      %v422 = vunpack.c.l.b16 %v352
      %v423 = vunpack.c.l.b16 %v353
      %v424 = vunpack.c.l.b16 %v354
      %v425 = vunpack.c.l.b16 %v355
      %v426 = vunpack.c.l.b16 %v356
      %v427 = vunpack.c.l.b16 %v357
      %v428 = vunpack.c.l.b16 %v358
      %v429 = vunpack.c.l.b16 %v359
      %v430 = vunpack.c.l.b16 %v360
      %v431 = vpack.c.b16 %v400, %v399
      %v432 = vpack.c.b16 %v402, %v401
      %v433 = vpack.c.b16 %v404, %v403
      %v434 = vpack.c.b16 %v406, %v405
      %v435 = vpack.c.b16 %v408, %v407
      %v436 = vpack.c.b16 %v410, %v409
      %v437 = vpack.c.b16 %v412, %v411
      %v438 = vpack.c.b16 %v414, %v413
      %v439 = vpack.c.b16 %v416, %v415
      %v440 = vpack.c.b16 %v418, %v417
      %v441 = vpack.c.b16 %v420, %v419
      %v442 = vpack.c.b16 %v422, %v421
      %v443 = vpack.c.b16 %v424, %v423
      %v444 = vpack.c.b16 %v426, %v425
      %v445 = vpack.c.b16 %v428, %v427
      %v446 = vpack.c.b16 %v430, %v429
      %v453 = vunpack.c.l.b16 %v361
      %v454 = vunpack.c.l.b16 %v362
      %v455 = vunpack.c.l.b16 %v363
      %v456 = vunpack.c.l.b16 %v364
      %v457 = vunpack.c.l.b16 %v365
      %v458 = vunpack.c.l.b16 %v366
      %v459 = vpack.c.b16 %v454, %v453
      %v460 = vpack.c.b16 %v456, %v455
      %v461 = vpack.c.b16 %v458, %v457
      %vm465 = vcmask 392192
      %v467 = vsel %vm465, %v431, 0
      %v470 = vsel %vm465, %v432, 0
      %v473 = vsel %vm465, %v433, 0
      %v476 = vsel %vm465, %v434, 0
      %v479 = vsel %vm465, %v435, 0
      %v482 = vsel %vm465, %v436, 0
      %v485 = vsel %vm465, %v437, 0
      %v488 = vsel %vm465, %v438, 0
      %v491 = vsel %vm465, %v439, 0
      %v494 = vsel %vm465, %v440, 0
      %v497 = vsel %vm465, %v441, 0
      %v500 = vsel %vm465, %v442, 0
      %v503 = vsel %vm465, %v443, 0
      %v506 = vsel %vm465, %v444, 0
      %v509 = vsel %vm465, %v445, 0
      %v512 = vsel %vm465, %v446, 0
      %514 = vmatprep.subr.bf16.mxu0 0
      %515 = vmatpush1.bf16.msra.mxu0 %v459
      %516 = vmatprep.subr.bf16.mxu0 0
      %517 = vmatpush1.bf16.msra.mxu0 %v460
      %518 = vmatprep.subr.bf16.mxu0 0
      %519 = vmatpush1.bf16.msra.mxu0 %v461
      %520 = vmatprep.subr.bf16.mxu0 0
      %521 = vmatpush1.bf16.msra.mxu0 0
      %522 = vmatprep.subr.bf16.mxu0 0
      %523 = vmatpush1.bf16.msra.mxu0 0
      %524 = vmatprep.subr.bf16.mxu0 0
      %525 = vmatpush1.bf16.msra.mxu0 0
      %526 = vmatprep.subr.bf16.mxu0 0
      %527 = vmatpush1.bf16.msra.mxu0 0
      %528 = vmatprep.subr.bf16.mxu0 0
      %529 = vmatpush1.bf16.msra.mxu0 0
      %530 = vmatprep.subr.bf16.mxu0 0
      %531 = vmatpush1.bf16.msra.mxu0 0
      %532 = vmatprep.subr.bf16.mxu0 0
      %533 = vmatpush1.bf16.msra.mxu0 0
      %534 = vmatprep.subr.bf16.mxu0 0
      %535 = vmatpush1.bf16.msra.mxu0 0
      %536 = vmatprep.subr.bf16.mxu0 0
      %537 = vmatpush1.bf16.msra.mxu0 0
      %538 = vmatprep.subr.bf16.mxu0 0
      %539 = vmatpush1.bf16.msra.mxu0 0
      %540 = vmatprep.subr.bf16.mxu0 0
      %541 = vmatpush1.bf16.msra.mxu0 0
      %542 = vmatprep.subr.bf16.mxu0 0
      %543 = vmatpush1.bf16.msra.mxu0 0
      %544 = vmatprep.subr.bf16.mxu0 0
      %545 = vmatpush1.bf16.msra.mxu0 0
      %546 = vmatprep.mubr.bf16.mxu0 0
      %547 = vmatmul.mubr.bf16.gmra.mrb[0].mxu0 %v467
      %v548 = vpop.f32.mrb[0].mxu0
      %v549 = vadd.f32 0.0, %v548
      %v550 = vpop.f32.mrb[0].mxu0
      %v551 = vpop.f32.mrb[0].mxu0
      %v552 = vadd.f32 0.0, %v551
      %v553 = vpop.f32.mrb[0].mxu0
      %554 = vmatprep.mubr.bf16.mxu0 0
      %555 = vmatmul.mubr.bf16.gmra.mrb[0].mxu0 %v470
      %v556 = vpop.f32.mrb[0].mxu0
      %v557 = vadd.f32 0.0, %v556
      %v558 = vpop.f32.mrb[0].mxu0
      %v559 = vpop.f32.mrb[0].mxu0
      %v560 = vadd.f32 0.0, %v559
      %v561 = vpop.f32.mrb[0].mxu0
      %562 = vmatprep.mubr.bf16.mxu0 0
      %563 = vmatmul.mubr.bf16.gmra.mrb[0].mxu0 %v473
      %v564 = vpop.f32.mrb[0].mxu0
      %v565 = vadd.f32 0.0, %v564
      %v566 = vpop.f32.mrb[0].mxu0
      %v567 = vpop.f32.mrb[0].mxu0
      %v568 = vadd.f32 0.0, %v567
      %v569 = vpop.f32.mrb[0].mxu0
      %570 = vmatprep.mubr.bf16.mxu0 0
      %571 = vmatmul.mubr.bf16.gmra.mrb[0].mxu0 %v476
      %v572 = vpop.f32.mrb[0].mxu0
      %v573 = vadd.f32 0.0, %v572
      %v574 = vpop.f32.mrb[0].mxu0
      %v575 = vpop.f32.mrb[0].mxu0
      %v576 = vadd.f32 0.0, %v575
      %v577 = vpop.f32.mrb[0].mxu0
      %578 = vmatprep.mubr.bf16.mxu0 0
      %579 = vmatmul.mubr.bf16.gmra.mrb[0].mxu0 %v479
      %v580 = vpop.f32.mrb[0].mxu0
      %v581 = vadd.f32 0.0, %v580
      %v582 = vpop.f32.mrb[0].mxu0
      %v583 = vpop.f32.mrb[0].mxu0
      %v584 = vadd.f32 0.0, %v583
      %v585 = vpop.f32.mrb[0].mxu0
      %586 = vmatprep.mubr.bf16.mxu0 0
      %587 = vmatmul.mubr.bf16.gmra.mrb[0].mxu0 %v482
      %v588 = vpop.f32.mrb[0].mxu0
      %v589 = vadd.f32 0.0, %v588
      %v590 = vpop.f32.mrb[0].mxu0
      %v591 = vpop.f32.mrb[0].mxu0
      %v592 = vadd.f32 0.0, %v591
      %v593 = vpop.f32.mrb[0].mxu0
      %594 = vmatprep.mubr.bf16.mxu0 0
      %595 = vmatmul.mubr.bf16.gmra.mrb[0].mxu0 %v485
      %v596 = vpop.f32.mrb[0].mxu0
      %v597 = vadd.f32 0.0, %v596
      %v598 = vpop.f32.mrb[0].mxu0
      %v599 = vpop.f32.mrb[0].mxu0
      %v600 = vadd.f32 0.0, %v599
      %v601 = vpop.f32.mrb[0].mxu0
      %602 = vmatprep.mubr.bf16.mxu0 0
      %603 = vmatmul.mubr.bf16.gmra.mrb[0].mxu0 %v488
      %v604 = vpop.f32.mrb[0].mxu0
      %v605 = vadd.f32 0.0, %v604
      %v606 = vpop.f32.mrb[0].mxu0
      %v607 = vpop.f32.mrb[0].mxu0
      %v608 = vadd.f32 0.0, %v607
      %v609 = vpop.f32.mrb[0].mxu0
      %610 = vmatprep.mubr.bf16.mxu0 0
      %611 = vmatmul.mubr.bf16.gmra.mrb[0].mxu0 %v491
      %v612 = vpop.f32.mrb[0].mxu0
      %v613 = vadd.f32 0.0, %v612
      %v614 = vpop.f32.mrb[0].mxu0
      %v615 = vpop.f32.mrb[0].mxu0
      %v616 = vadd.f32 0.0, %v615
      %v617 = vpop.f32.mrb[0].mxu0
      %618 = vmatprep.mubr.bf16.mxu0 0
      %619 = vmatmul.mubr.bf16.gmra.mrb[0].mxu0 %v494
      %v620 = vpop.f32.mrb[0].mxu0
      %v621 = vadd.f32 0.0, %v620
      %v622 = vpop.f32.mrb[0].mxu0
      %v623 = vpop.f32.mrb[0].mxu0
      %v624 = vadd.f32 0.0, %v623
      %v625 = vpop.f32.mrb[0].mxu0
      %626 = vmatprep.mubr.bf16.mxu0 0
      %627 = vmatmul.mubr.bf16.gmra.mrb[0].mxu0 %v497
      %v628 = vpop.f32.mrb[0].mxu0
      %v629 = vadd.f32 0.0, %v628
      %v630 = vpop.f32.mrb[0].mxu0
      %v631 = vpop.f32.mrb[0].mxu0
      %v632 = vadd.f32 0.0, %v631
      %v633 = vpop.f32.mrb[0].mxu0
      %634 = vmatprep.mubr.bf16.mxu0 0
      %635 = vmatmul.mubr.bf16.gmra.mrb[0].mxu0 %v500
      %v636 = vpop.f32.mrb[0].mxu0
      %v637 = vadd.f32 0.0, %v636
      %v638 = vpop.f32.mrb[0].mxu0
      %v639 = vpop.f32.mrb[0].mxu0
      %v640 = vadd.f32 0.0, %v639
      %v641 = vpop.f32.mrb[0].mxu0
      %642 = vmatprep.mubr.bf16.mxu0 0
      %643 = vmatmul.mubr.bf16.gmra.mrb[0].mxu0 %v503
      %v644 = vpop.f32.mrb[0].mxu0
      %v645 = vadd.f32 0.0, %v644
      %v646 = vpop.f32.mrb[0].mxu0
      %v647 = vpop.f32.mrb[0].mxu0
      %v648 = vadd.f32 0.0, %v647
      %v649 = vpop.f32.mrb[0].mxu0
      %650 = vmatprep.mubr.bf16.mxu0 0
      %651 = vmatmul.mubr.bf16.gmra.mrb[0].mxu0 %v506
      %v652 = vpop.f32.mrb[0].mxu0
      %v653 = vadd.f32 0.0, %v652
      %v654 = vpop.f32.mrb[0].mxu0
      %v655 = vpop.f32.mrb[0].mxu0
      %v656 = vadd.f32 0.0, %v655
      %v657 = vpop.f32.mrb[0].mxu0
      %658 = vmatprep.mubr.bf16.mxu0 0
      %659 = vmatmul.mubr.bf16.gmra.mrb[0].mxu0 %v509
      %v660 = vpop.f32.mrb[0].mxu0
      %v661 = vadd.f32 0.0, %v660
      %v662 = vpop.f32.mrb[0].mxu0
      %v663 = vpop.f32.mrb[0].mxu0
      %v664 = vadd.f32 0.0, %v663
      %v665 = vpop.f32.mrb[0].mxu0
      %666 = vmatprep.mubr.bf16.mxu0 0
      %667 = vmatmul.mubr.bf16.gmra.mrb[0].mxu0 %v512
      %v668 = vpop.f32.mrb[0].mxu0
      %v669 = vadd.f32 0.0, %v668
      %v670 = vpop.f32.mrb[0].mxu0
      %v671 = vpop.f32.mrb[0].mxu0
      %v672 = vadd.f32 0.0, %v671
      %v673 = vpop.f32.mrb[0].mxu0
      %674 = vdwg.mxu0
      %v675 = vadd.f32 %v297, %v549
      %v676 = vadd.f32 %v298, %v552
      %v677 = vadd.f32 %v299, %v557
      %v678 = vadd.f32 %v300, %v560
      %v679 = vadd.f32 %v301, %v565
      %v680 = vadd.f32 %v302, %v568
      %v681 = vadd.f32 %v303, %v573
      %v682 = vadd.f32 %v304, %v576
      %v683 = vadd.f32 %v305, %v581
      %v684 = vadd.f32 %v306, %v584
      %v685 = vadd.f32 %v307, %v589
      %v686 = vadd.f32 %v308, %v592
      %v687 = vadd.f32 %v309, %v597
      %v688 = vadd.f32 %v310, %v600
      %v689 = vadd.f32 %v311, %v605
      %v690 = vadd.f32 %v312, %v608
      %v691 = vadd.f32 %v313, %v613
      %v692 = vadd.f32 %v314, %v616
      %v693 = vadd.f32 %v315, %v621
      %v694 = vadd.f32 %v316, %v624
      %v695 = vadd.f32 %v317, %v629
      %v696 = vadd.f32 %v318, %v632
      %v697 = vadd.f32 %v319, %v637
      %v698 = vadd.f32 %v320, %v640
      %v699 = vadd.f32 %v321, %v645
      %v700 = vadd.f32 %v322, %v648
      %v701 = vadd.f32 %v323, %v653
      %v702 = vadd.f32 %v324, %v656
      %v703 = vadd.f32 %v325, %v661
      %v704 = vadd.f32 %v326, %v664
      %v705 = vadd.f32 %v327, %v669
      %v706 = vadd.f32 %v328, %v672
      %vm707 = vcmask 261120
      %708 = vst.msk [vmem:[#allocation2] sm:$0xff] %vm707, %v675
      %709 = vst.msk [vmem:[#allocation2 + $0x8] sm:$0xff] %vm707, %v676
      %710 = vst.msk [vmem:[#allocation2 + $0x10] sm:$0xff] %vm707, %v677
      %711 = vst.msk [vmem:[#allocation2 + $0x18] sm:$0xff] %vm707, %v678
      %712 = vst.msk [vmem:[#allocation2 + $0x20] sm:$0xff] %vm707, %v679
      %713 = vst.msk [vmem:[#allocation2 + $0x28] sm:$0xff] %vm707, %v680
      %714 = vst.msk [vmem:[#allocation2 + $0x30] sm:$0xff] %vm707, %v681
      %715 = vst.msk [vmem:[#allocation2 + $0x38] sm:$0xff] %vm707, %v682
      %716 = vst.msk [vmem:[#allocation2 + $0x40] sm:$0xff] %vm707, %v683
      %717 = vst.msk [vmem:[#allocation2 + $0x48] sm:$0xff] %vm707, %v684
      %718 = vst.msk [vmem:[#allocation2 + $0x50] sm:$0xff] %vm707, %v685
      %719 = vst.msk [vmem:[#allocation2 + $0x58] sm:$0xff] %vm707, %v686
      %720 = vst.msk [vmem:[#allocation2 + $0x60] sm:$0xff] %vm707, %v687
      %721 = vst.msk [vmem:[#allocation2 + $0x68] sm:$0xff] %vm707, %v688
      %722 = vst.msk [vmem:[#allocation2 + $0x70] sm:$0xff] %vm707, %v689
      %723 = vst.msk [vmem:[#allocation2 + $0x78] sm:$0xff] %vm707, %v690
      %724 = vst.msk [vmem:[#allocation2 + $0x80] sm:$0xff] %vm707, %v691
      %725 = vst.msk [vmem:[#allocation2 + $0x88] sm:$0xff] %vm707, %v692
      %726 = vst.msk [vmem:[#allocation2 + $0x90] sm:$0xff] %vm707, %v693
      %727 = vst.msk [vmem:[#allocation2 + $0x98] sm:$0xff] %vm707, %v694
      %728 = vst.msk [vmem:[#allocation2 + $0xa0] sm:$0xff] %vm707, %v695
      %729 = vst.msk [vmem:[#allocation2 + $0xa8] sm:$0xff] %vm707, %v696
      %730 = vst.msk [vmem:[#allocation2 + $0xb0] sm:$0xff] %vm707, %v697
      %731 = vst.msk [vmem:[#allocation2 + $0xb8] sm:$0xff] %vm707, %v698
      %732 = vst.msk [vmem:[#allocation2 + $0xc0] sm:$0xff] %vm707, %v699
      %733 = vst.msk [vmem:[#allocation2 + $0xc8] sm:$0xff] %vm707, %v700
      %734 = vst.msk [vmem:[#allocation2 + $0xd0] sm:$0xff] %vm707, %v701
      %735 = vst.msk [vmem:[#allocation2 + $0xd8] sm:$0xff] %vm707, %v702
      %736 = vst.msk [vmem:[#allocation2 + $0xe0] sm:$0xff] %vm707, %v703
      %737 = vst.msk [vmem:[#allocation2 + $0xe8] sm:$0xff] %vm707, %v704
      %738 = vst.msk [vmem:[#allocation2 + $0xf0] sm:$0xff] %vm707, %v705
      %739 = vst.msk [vmem:[#allocation2 + $0xf8] sm:$0xff] %vm707, %v706
      // Predicated region
      $region37: #{tpu_custom_call.1} parent=31 // pred_check
        %p740 = pneg %p260
      $region38: #{tpu_custom_call.1} parent=31 // pred_check_branch
        %742 = sbr.rel (%p740) target = $region40
      $region39: #{tpu_custom_call.1} parent=31 // pred_region
        %v743 = vld [vmem:[#allocation2] sm:$0xff]
        %v744 = vld [vmem:[#allocation2 + $0x8] sm:$0xff]
        %v745 = vld [vmem:[#allocation2 + $0x10] sm:$0xff]
        %v746 = vld [vmem:[#allocation2 + $0x18] sm:$0xff]
        %v747 = vld [vmem:[#allocation2 + $0x20] sm:$0xff]
        %v748 = vld [vmem:[#allocation2 + $0x28] sm:$0xff]
        %v749 = vld [vmem:[#allocation2 + $0x30] sm:$0xff]
        %v750 = vld [vmem:[#allocation2 + $0x38] sm:$0xff]
        %v751 = vld [vmem:[#allocation2 + $0x40] sm:$0xff]
        %v752 = vld [vmem:[#allocation2 + $0x48] sm:$0xff]
        %v753 = vld [vmem:[#allocation2 + $0x50] sm:$0xff]
        %v754 = vld [vmem:[#allocation2 + $0x58] sm:$0xff]
        %v755 = vld [vmem:[#allocation2 + $0x60] sm:$0xff]
        %v756 = vld [vmem:[#allocation2 + $0x68] sm:$0xff]
        %v757 = vld [vmem:[#allocation2 + $0x70] sm:$0xff]
        %v758 = vld [vmem:[#allocation2 + $0x78] sm:$0xff]
        %v759 = vld [vmem:[#allocation2 + $0x80] sm:$0xff]
        %v760 = vld [vmem:[#allocation2 + $0x88] sm:$0xff]
        %v761 = vld [vmem:[#allocation2 + $0x90] sm:$0xff]
        %v762 = vld [vmem:[#allocation2 + $0x98] sm:$0xff]
        %v763 = vld [vmem:[#allocation2 + $0xa0] sm:$0xff]
        %v764 = vld [vmem:[#allocation2 + $0xa8] sm:$0xff]
        %v765 = vld [vmem:[#allocation2 + $0xb0] sm:$0xff]
        %v766 = vld [vmem:[#allocation2 + $0xb8] sm:$0xff]
        %v767 = vld [vmem:[#allocation2 + $0xc0] sm:$0xff]
        %v768 = vld [vmem:[#allocation2 + $0xc8] sm:$0xff]
        %v769 = vld [vmem:[#allocation2 + $0xd0] sm:$0xff]
        %v770 = vld [vmem:[#allocation2 + $0xd8] sm:$0xff]
        %v771 = vld [vmem:[#allocation2 + $0xe0] sm:$0xff]
        %v772 = vld [vmem:[#allocation2 + $0xe8] sm:$0xff]
        %v773 = vld [vmem:[#allocation2 + $0xf0] sm:$0xff]
        %v774 = vld [vmem:[#allocation2 + $0xf8] sm:$0xff]
        %v775 = vld [vmem:[%s249] sm:$0x1]
        %v777 = vlaneseq
        %v778 = vshrl.u32 %v777, 7
        %v779 = vsub.s32 0, %v778
        %v780 = vrot.slane %v775, %v779
        %v782 = vadd.f32 %v743, %v780
        %v783 = vadd.f32 %v744, %v780
        %v784 = vadd.f32 %v745, %v780
        %v785 = vadd.f32 %v746, %v780
        %v786 = vadd.f32 %v747, %v780
        %v787 = vadd.f32 %v748, %v780
        %v788 = vadd.f32 %v749, %v780
        %v789 = vadd.f32 %v750, %v780
        %v790 = vadd.f32 %v751, %v780
        %v791 = vadd.f32 %v752, %v780
        %v792 = vadd.f32 %v753, %v780
        %v793 = vadd.f32 %v754, %v780
        %v794 = vadd.f32 %v755, %v780
        %v795 = vadd.f32 %v756, %v780
        %v796 = vadd.f32 %v757, %v780
        %v797 = vadd.f32 %v758, %v780
        %v798 = vadd.f32 %v759, %v780
        %v799 = vadd.f32 %v760, %v780
        %v800 = vadd.f32 %v761, %v780
        %v801 = vadd.f32 %v762, %v780
        %v802 = vadd.f32 %v763, %v780
        %v803 = vadd.f32 %v764, %v780
        %v804 = vadd.f32 %v765, %v780
        %v805 = vadd.f32 %v766, %v780
        %v806 = vadd.f32 %v767, %v780
        %v807 = vadd.f32 %v768, %v780
        %v808 = vadd.f32 %v769, %v780
        %v809 = vadd.f32 %v770, %v780
        %v810 = vadd.f32 %v771, %v780
        %v811 = vadd.f32 %v772, %v780
        %v812 = vadd.f32 %v773, %v780
        %v813 = vadd.f32 %v774, %v780
        %v814 = vmax.f32 %v782, 0.0
        %v815 = vmax.f32 %v783, 0.0
        %v816 = vmax.f32 %v784, 0.0
        %v817 = vmax.f32 %v785, 0.0
        %v818 = vmax.f32 %v786, 0.0
        %v819 = vmax.f32 %v787, 0.0
        %v820 = vmax.f32 %v788, 0.0
        %v821 = vmax.f32 %v789, 0.0
        %v822 = vmax.f32 %v790, 0.0
        %v823 = vmax.f32 %v791, 0.0
        %v824 = vmax.f32 %v792, 0.0
        %v825 = vmax.f32 %v793, 0.0
        %v826 = vmax.f32 %v794, 0.0
        %v827 = vmax.f32 %v795, 0.0
        %v828 = vmax.f32 %v796, 0.0
        %v829 = vmax.f32 %v797, 0.0
        %v830 = vmax.f32 %v798, 0.0
        %v831 = vmax.f32 %v799, 0.0
        %v832 = vmax.f32 %v800, 0.0
        %v833 = vmax.f32 %v801, 0.0
        %v834 = vmax.f32 %v802, 0.0
        %v835 = vmax.f32 %v803, 0.0
        %v836 = vmax.f32 %v804, 0.0
        %v837 = vmax.f32 %v805, 0.0
        %v838 = vmax.f32 %v806, 0.0
        %v839 = vmax.f32 %v807, 0.0
        %v840 = vmax.f32 %v808, 0.0
        %v841 = vmax.f32 %v809, 0.0
        %v842 = vmax.f32 %v810, 0.0
        %v843 = vmax.f32 %v811, 0.0
        %v844 = vmax.f32 %v812, 0.0
        %v845 = vmax.f32 %v813, 0.0
        %v846 = vpack.c.bf16 %v815, %v814
        %v847 = vpack.c.bf16 %v817, %v816
        %v848 = vpack.c.bf16 %v819, %v818
        %v849 = vpack.c.bf16 %v821, %v820
        %v850 = vpack.c.bf16 %v823, %v822
        %v851 = vpack.c.bf16 %v825, %v824
        %v852 = vpack.c.bf16 %v827, %v826
        %v853 = vpack.c.bf16 %v829, %v828
        %v854 = vpack.c.bf16 %v831, %v830
        %v855 = vpack.c.bf16 %v833, %v832
        %v856 = vpack.c.bf16 %v835, %v834
        %v857 = vpack.c.bf16 %v837, %v836
        %v858 = vpack.c.bf16 %v839, %v838
        %v859 = vpack.c.bf16 %v841, %v840
        %v860 = vpack.c.bf16 %v843, %v842
        %v861 = vpack.c.bf16 %v845, %v844
        %v878 = vunpack.c.l.b16 %v846
        %v879 = vunpack.c.h.b16 %v846
        %v880 = vunpack.c.l.b16 %v847
        %v881 = vunpack.c.h.b16 %v847
        %v882 = vunpack.c.l.b16 %v848
        %v883 = vunpack.c.h.b16 %v848
        %v884 = vunpack.c.l.b16 %v849
        %v885 = vunpack.c.h.b16 %v849
        %v886 = vunpack.c.l.b16 %v850
        %v887 = vunpack.c.h.b16 %v850
        %v888 = vunpack.c.l.b16 %v851
        %v889 = vunpack.c.h.b16 %v851
        %v890 = vunpack.c.l.b16 %v852
        %v891 = vunpack.c.h.b16 %v852
        %v892 = vunpack.c.l.b16 %v853
        %v893 = vunpack.c.h.b16 %v853
        %v894 = vunpack.c.l.b16 %v854
        %v895 = vunpack.c.h.b16 %v854
        %v896 = vunpack.c.l.b16 %v855
        %v897 = vunpack.c.h.b16 %v855
        %v898 = vunpack.c.l.b16 %v856
        %v899 = vunpack.c.h.b16 %v856
        %v900 = vunpack.c.l.b16 %v857
        %v901 = vunpack.c.h.b16 %v857
        %v902 = vunpack.c.l.b16 %v858
        %v903 = vunpack.c.h.b16 %v858
        %v904 = vunpack.c.l.b16 %v859
        %v905 = vunpack.c.h.b16 %v859
        %v906 = vunpack.c.l.b16 %v860
        %v907 = vunpack.c.h.b16 %v860
        %v908 = vunpack.c.l.b16 %v861
        %v909 = vunpack.c.h.b16 %v861
        %v910 = vpack.c.b16 %v878, %v878
        %v911 = vpack.c.b16 %v879, %v879
        %v912 = vpack.c.b16 %v880, %v880
        %v913 = vpack.c.b16 %v881, %v881
        %v914 = vpack.c.b16 %v882, %v882
        %v915 = vpack.c.b16 %v883, %v883
        %v916 = vpack.c.b16 %v884, %v884
        %v917 = vpack.c.b16 %v885, %v885
        %v918 = vpack.c.b16 %v886, %v886
        %v919 = vpack.c.b16 %v887, %v887
        %v920 = vpack.c.b16 %v888, %v888
        %v921 = vpack.c.b16 %v889, %v889
        %v922 = vpack.c.b16 %v890, %v890
        %v923 = vpack.c.b16 %v891, %v891
        %v924 = vpack.c.b16 %v892, %v892
        %v925 = vpack.c.b16 %v893, %v893
        %v926 = vpack.c.b16 %v894, %v894
        %v927 = vpack.c.b16 %v895, %v895
        %v928 = vpack.c.b16 %v896, %v896
        %v929 = vpack.c.b16 %v897, %v897
        %v930 = vpack.c.b16 %v898, %v898
        %v931 = vpack.c.b16 %v899, %v899
        %v932 = vpack.c.b16 %v900, %v900
        %v933 = vpack.c.b16 %v901, %v901
        %v934 = vpack.c.b16 %v902, %v902
        %v935 = vpack.c.b16 %v903, %v903
        %v936 = vpack.c.b16 %v904, %v904
        %v937 = vpack.c.b16 %v905, %v905
        %v938 = vpack.c.b16 %v906, %v906
        %v939 = vpack.c.b16 %v907, %v907
        %v940 = vpack.c.b16 %v908, %v908
        %v941 = vpack.c.b16 %v909, %v909
        %vm974 = vcmask 257024
        %975 = vst.msk [vmem:[%s257] sm:$0xf] %vm974, %v910
        %976 = vst.msk [vmem:[%s257 + $0x4] sm:$0xf] %vm974, %v911
        %977 = vst.msk [vmem:[%s257 + $0x8] sm:$0xf] %vm974, %v912
        %978 = vst.msk [vmem:[%s257 + $0xc] sm:$0xf] %vm974, %v913
        %979 = vst.msk [vmem:[%s257 + $0x10] sm:$0xf] %vm974, %v914
        %980 = vst.msk [vmem:[%s257 + $0x14] sm:$0xf] %vm974, %v915
        %981 = vst.msk [vmem:[%s257 + $0x18] sm:$0xf] %vm974, %v916
        %982 = vst.msk [vmem:[%s257 + $0x1c] sm:$0xf] %vm974, %v917
        %983 = vst.msk [vmem:[%s257 + $0x20] sm:$0xf] %vm974, %v918
        %984 = vst.msk [vmem:[%s257 + $0x24] sm:$0xf] %vm974, %v919
        %985 = vst.msk [vmem:[%s257 + $0x28] sm:$0xf] %vm974, %v920
        %986 = vst.msk [vmem:[%s257 + $0x2c] sm:$0xf] %vm974, %v921
        %987 = vst.msk [vmem:[%s257 + $0x30] sm:$0xf] %vm974, %v922
        %988 = vst.msk [vmem:[%s257 + $0x34] sm:$0xf] %vm974, %v923
        %989 = vst.msk [vmem:[%s257 + $0x38] sm:$0xf] %vm974, %v924
        %990 = vst.msk [vmem:[%s257 + $0x3c] sm:$0xf] %vm974, %v925
        %991 = vst.msk [vmem:[%s257 + $0x40] sm:$0xf] %vm974, %v926
        %992 = vst.msk [vmem:[%s257 + $0x44] sm:$0xf] %vm974, %v927
        %993 = vst.msk [vmem:[%s257 + $0x48] sm:$0xf] %vm974, %v928
        %994 = vst.msk [vmem:[%s257 + $0x4c] sm:$0xf] %vm974, %v929
        %995 = vst.msk [vmem:[%s257 + $0x50] sm:$0xf] %vm974, %v930
        %996 = vst.msk [vmem:[%s257 + $0x54] sm:$0xf] %vm974, %v931
        %997 = vst.msk [vmem:[%s257 + $0x58] sm:$0xf] %vm974, %v932
        %998 = vst.msk [vmem:[%s257 + $0x5c] sm:$0xf] %vm974, %v933
        %999 = vst.msk [vmem:[%s257 + $0x60] sm:$0xf] %vm974, %v934
        %1000 = vst.msk [vmem:[%s257 + $0x64] sm:$0xf] %vm974, %v935
        %1001 = vst.msk [vmem:[%s257 + $0x68] sm:$0xf] %vm974, %v936
        %1002 = vst.msk [vmem:[%s257 + $0x6c] sm:$0xf] %vm974, %v937
        %1003 = vst.msk [vmem:[%s257 + $0x70] sm:$0xf] %vm974, %v938
        %1004 = vst.msk [vmem:[%s257 + $0x74] sm:$0xf] %vm974, %v939
        %1005 = vst.msk [vmem:[%s257 + $0x78] sm:$0xf] %vm974, %v940
        %1006 = vst.msk [vmem:[%s257 + $0x7c] sm:$0xf] %vm974, %v941
      $region40: #{tpu_custom_call.1} parent=31 // pred_fallthru
        _
      %s1007 = smul.u32 32, %s19
      %p1008 = scmp.lt.s32.totalorder %s1007, 255
      %s1009 = scalar_select %p1008, %s1007, 255
      %p1010 = scmp.lt.s32.totalorder %s20, 0
      %s1011 = scalar_select %p1010, %s20, 0
      %s1012 = sadd.s32 %s1011, %s1009
      %s1013 = smul.addr %s1012, 4
      %s1014 = scalar_lea.vmem %s3, %s1013
      // Predicated region
      $region41: #{tpu_custom_call.1} parent=31 // pred_check
        %p1015 = pneg %p135
      $region42: #{tpu_custom_call.1} parent=31 // pred_check_branch
        %1017 = sbr.rel (%p1015) target = $region44
      $region43: #{tpu_custom_call.1} parent=31 // pred_region
        %s1018 = smul.u32 32, %s19
      $region44: #{tpu_custom_call.1} parent=31 // pred_fallthru
        _
    $region32: #{tpu_custom_call.1} parent=5 // pred_fallthru
      _
    %p1019 = scmp.le.s32.totalorder 2, %s9
    // Predicated region
    $region45: #{tpu_custom_call.1} parent=5 // pred_check
      %p1020 = pneg %p1019
    $region46: #{tpu_custom_call.1} parent=5 // pred_check_branch
      %1022 = sbr.rel (%p1020) target = $region48
    $region47: #{tpu_custom_call.1} parent=5 // pred_region
      %s1023 = ssub.s32 %s9, 2
      // Predicated region
      $region49: #{tpu_custom_call.1} parent=47 // pred_check
        %p1024 = pneg %p141
      $region50: #{tpu_custom_call.1} parent=47 // pred_check_branch
        %1026 = sbr.rel (%p1024) target = $region52
      $region51: #{tpu_custom_call.1} parent=47 // pred_region
        %s1027 = smul.u32 32, %s22
        %p1028 = scmp.lt.s32.totalorder %s1027, 255
        %s1029 = scalar_select %p1028, %s1027, 255
        %p1030 = scmp.lt.s32.totalorder %s23, 0
        %s1031 = scalar_select %p1030, %s23, 0
        %s1032 = sadd.s32 %s1031, %s1029
        %s1033 = smul.addr %s1032, 4
        %s1034 = scalar_lea.vmem %s3, %s1033
      $region52: #{tpu_custom_call.1} parent=47 // pred_fallthru
        _
    $region48: #{tpu_custom_call.1} parent=5 // pred_fallthru
      _
  $region6: #{tpu_custom_call.1} parent=0 // loop_footer
    %s13 = sadd.s32 1, %s9
  $region7: #{tpu_custom_call.1} parent=0 // loop_footer_branch
    %8 = sbr.rel target = $region3
  $region8: #{tpu_custom_call.1} parent=0 // loop_exit
    _

</llo_original>
